<compile_context>
chip_gen: v7x
topology: tpu7x:2x2x1
jax: 0.10.0
libtpu: 0.0.40
codegen_flags: <defaults>
</compile_context>

<pallas_src>
import functools

import jax
import jax.numpy as jnp
import numpy as np
from jax.experimental import pallas as pl
from jax.experimental.pallas import tpu as pltpu

LN_EPS = 1e-5  # torch nn.LayerNorm default


def _round_up(x: int, m: int) -> int:
    return (x + m - 1) // m * m


def _pick_tile(m: int, tm: int) -> int:
    tm = _round_up(max(tm, 8), 8)          # keep tm a multiple of the f32 sublane
    return min(tm, _round_up(m, 8))        # don't tile far beyond the token count


def _layer_norm_f32(x, w, b, eps):
    """Biased-variance LayerNorm over the last dim (matches torch)."""
    mu = jnp.mean(x, axis=-1, keepdims=True)
    xc = x - mu
    var = jnp.mean(xc * xc, axis=-1, keepdims=True)
    return xc * jax.lax.rsqrt(var + eps) * w + b


# --------------------------------------------------------------------------- #
# Kernels
# --------------------------------------------------------------------------- #
def ln_qkv_kernel(x_ref, lnw_ref, lnb_ref, w_ref, b_ref, o_ref, *, eps):
    xn = _layer_norm_f32(x_ref[...].astype(jnp.float32),
                         lnw_ref[...], lnb_ref[...], eps)
    y = jnp.dot(xn, w_ref[...], preferred_element_type=jnp.float32)
    o_ref[...] = (y + b_ref[...]).astype(o_ref.dtype)


def attn_residual_kernel(x_ref, qkv_ref, o_ref, *, num_heads, head_dim,
                         inv_scale, seq_valid, seq_pad):
    """One batch element: out = x + merge_heads(softmax(floor(QK^T/s)) @ V)."""
    x = x_ref[...]                                     # (Spad, D) f32
    qkv = qkv_ref[...]                                 # (Spad, 3D) f32
    d = num_heads * head_dim
    need_mask = seq_valid < seq_pad                    # static (trace-time) bool
    if need_mask:
        col = jax.lax.broadcasted_iota(jnp.int32, (seq_pad, seq_pad), 1)
        keymask = col < seq_valid                      # mask padded KEY columns
    outs = []
    for h in range(num_heads):                         # static loop, H known
        lo = h * head_dim
        qh = qkv[:, lo:lo + head_dim]
        kh = qkv[:, d + lo:d + lo + head_dim]
        vh = qkv[:, 2 * d + lo:2 * d + lo + head_dim]
        s = jnp.dot(qh, kh.T, preferred_element_type=jnp.float32)   # (Spad,Spad)
        # PyTorch uses `//` -> floor division of the raw scores by sqrt(head_dim).
        s = jnp.floor(s * inv_scale)
        if need_mask:
            s = jnp.where(keymask, s, -1e30)
        e = jnp.exp(s - jnp.max(s, axis=-1, keepdims=True))
        p = e / jnp.sum(e, axis=-1, keepdims=True)
        outs.append(jnp.dot(p, vh, preferred_element_type=jnp.float32))
    attn = jnp.concatenate(outs, axis=-1)              # (Spad, D) merged heads
    o_ref[...] = (x + attn).astype(o_ref.dtype)        # fused residual add


def ln_mlp_residual_kernel(x_ref, lnw_ref, lnb_ref, w1_ref, b1_ref,
                           w2_ref, b2_ref, o_ref, *, eps):
    xf = x_ref[...].astype(jnp.float32)
    xn = _layer_norm_f32(xf, lnw_ref[...], lnb_ref[...], eps)
    # bf16 matmul inputs, f32 MXU accumulation, f32 bias adds (mixed precision).
    h = jnp.dot(xn.astype(w1_ref.dtype), w1_ref[...],
                preferred_element_type=jnp.float32) + b1_ref[...]
    y = jnp.dot(h.astype(w2_ref.dtype), w2_ref[...],
                preferred_element_type=jnp.float32) + b2_ref[...]
    o_ref[...] = (xf + y).astype(o_ref.dtype)          # fused residual add


# --------------------------------------------------------------------------- #
# pallas_call wrappers
# --------------------------------------------------------------------------- #
def _ln_qkv(x2d, ln_w, ln_b, wqkv, bqkv, *, tm=256):
    """LayerNorm + QKV projection over the flattened token matrix."""
    M, D = x2d.shape
    out_dim = wqkv.shape[1]
    tm = _pick_tile(M, tm)
    Mpad = _round_up(M, tm)
    if Mpad != M:                                       # pad instead of asserting
        x2d = jnp.pad(x2d, ((0, Mpad - M), (0, 0)))

    cost = pl.CostEstimate(
        flops=2 * Mpad * D * out_dim,
        transcendentals=Mpad,                           # one rsqrt per token row
        bytes_accessed=Mpad * D * 4 + Mpad * out_dim * 4 + D * out_dim * 4,
    )

    out = pl.pallas_call(
        functools.partial(ln_qkv_kernel, eps=LN_EPS),
        out_shape=jax.ShapeDtypeStruct((Mpad, out_dim), jnp.float32),
        grid_spec=pltpu.PrefetchScalarGridSpec(
            num_scalar_prefetch=0,
            grid=(Mpad // tm,),
            in_specs=[
                pl.BlockSpec((tm, D), lambda i: (i, 0)),        # x tile
                pl.BlockSpec((1, D), lambda i: (0, 0)),         # LN weight (resident)
                pl.BlockSpec((1, D), lambda i: (0, 0)),         # LN bias
                pl.BlockSpec((D, out_dim), lambda i: (0, 0)),   # Wqkv^T (resident)
                pl.BlockSpec((1, out_dim), lambda i: (0, 0)),   # bqkv
            ],
            out_specs=pl.BlockSpec((tm, out_dim), lambda i: (i, 0)),
        ),
        compiler_params=pltpu.CompilerParams(
            dimension_semantics=("parallel",)),
        cost_estimate=cost,
    )(x2d, ln_w.reshape(1, D), ln_b.reshape(1, D), wqkv, bqkv.reshape(1, out_dim))
    return out[:M]


def _attn_residual(x2d, qkv2d, *, num_heads, seq_valid, seq_pad):
    """x2d: (B*Spad, D), qkv2d: (B*Spad, 3D) -> x + merged attention, (B*Spad, D)."""
    M, D = x2d.shape
    B = M // seq_pad
    Dh = D // num_heads
    inv_scale = 1.0 / (Dh ** 0.5)

    cost = pl.CostEstimate(
        flops=4 * B * num_heads * seq_pad * seq_pad * Dh,     # QK^T and PV
        transcendentals=B * num_heads * seq_pad * seq_pad,    # exp per score
        bytes_accessed=M * (3 * D + 2 * D) * 4,
    )

    kernel = functools.partial(attn_residual_kernel, num_heads=num_heads,
                               head_dim=Dh, inv_scale=inv_scale,
                               seq_valid=seq_valid, seq_pad=seq_pad)
    return pl.pallas_call(
        kernel,
        out_shape=jax.ShapeDtypeStruct((M, D), jnp.float32),
        grid_spec=pltpu.PrefetchScalarGridSpec(
            num_scalar_prefetch=0,
            grid=(B,),
            in_specs=[
                pl.BlockSpec((seq_pad, D), lambda b: (b, 0)),        # x block
                pl.BlockSpec((seq_pad, 3 * D), lambda b: (b, 0)),    # qkv block
            ],
            out_specs=pl.BlockSpec((seq_pad, D), lambda b: (b, 0)),  # lane-dense
        ),
        compiler_params=pltpu.CompilerParams(
            dimension_semantics=("parallel",)),
        cost_estimate=cost,
    )(x2d, qkv2d)


def _ln_mlp_residual(x2d, ln_w, ln_b, w1, b1, w2, b2, *, tm=256):
    """out = x + ln_2(ln_1(LayerNorm(x))) fused per token tile (bf16 matmuls)."""
    M, D = x2d.shape
    mlp_dim = w1.shape[1]
    tm = _pick_tile(M, tm)
    Mpad = _round_up(M, tm)
    if Mpad != M:
        x2d = jnp.pad(x2d, ((0, Mpad - M), (0, 0)))

    # Explicit VMEM budget: resident params + pipelined x/out tiles + h scratch.
    w_bytes = w1.size * w1.dtype.itemsize + w2.size * w2.dtype.itemsize
    p_bytes = (3 * D + mlp_dim) * 4
    tile_bytes = 2 * (tm * D * 4) + 2 * (tm * D * 4) + tm * mlp_dim * 4
    vmem_limit = min(64 << 20, 2 * (w_bytes + p_bytes + tile_bytes) + (8 << 20))

    cost = pl.CostEstimate(
        flops=4 * Mpad * D * mlp_dim,                 # two matmuls
        transcendentals=Mpad,                         # one rsqrt per token row
        bytes_accessed=2 * Mpad * D * 4 + w_bytes + p_bytes,
    )

    out = pl.pallas_call(
        functools.partial(ln_mlp_residual_kernel, eps=LN_EPS),
        out_shape=jax.ShapeDtypeStruct((Mpad, D), jnp.float32),
        grid_spec=pltpu.PrefetchScalarGridSpec(
            num_scalar_prefetch=0,
            grid=(Mpad // tm,),
            in_specs=[
                pl.BlockSpec((tm, D), lambda i: (i, 0)),          # x tile
                # Constant index maps keep the params VMEM-resident across steps.
                # For ViT-L/H-sized weights, add pipeline_mode=pl.Buffered(1) on
                # these specs (no double buffer) and/or chunk mlp_dim on a second
                # "arbitrary" grid axis with an f32 accumulator (v7x 64 MiB VMEM).
                pl.BlockSpec((1, D), lambda i: (0, 0)),           # LN weight
                pl.BlockSpec((1, D), lambda i: (0, 0)),           # LN bias
                pl.BlockSpec((D, mlp_dim), lambda i: (0, 0)),     # W1^T (bf16)
                pl.BlockSpec((1, mlp_dim), lambda i: (0, 0)),     # b1 (f32)
                pl.BlockSpec((mlp_dim, D), lambda i: (0, 0)),     # W2^T (bf16)
                pl.BlockSpec((1, D), lambda i: (0, 0)),           # b2 (f32)
            ],
            out_specs=pl.BlockSpec((tm, D), lambda i: (i, 0)),    # lane-dense (D%128==0)
        ),
        compiler_params=pltpu.CompilerParams(
            dimension_semantics=("parallel",),
            vmem_limit_bytes=int(vmem_limit)),
        cost_estimate=cost,
    )(x2d, ln_w.reshape(1, D), ln_b.reshape(1, D),
      w1, b1.reshape(1, mlp_dim), w2, b2.reshape(1, D))
    return out[:M]


# --------------------------------------------------------------------------- #
# Encoder forward (Pallas) and pure-JAX reference
# --------------------------------------------------------------------------- #
def encoder_forward(x, params, *, num_heads, num_layers, tm=256):
    """x: (B, S, D) f32. The same EncoderBlock params are reused every layer."""
    B, S, D = x.shape
    Spad = _round_up(S, 8)
    if Spad != S:                    # pad seq per batch; padded keys are masked
        x = jnp.pad(x, ((0, 0), (0, Spad - S), (0, 0)))
    x2d = x.reshape(B * Spad, D)
    for _ in range(num_layers):
        # --- attention sub-block: x + merge_heads(attn(LN(x))) ---
        qkv2d = _ln_qkv(x2d, params["ln_w"], params["ln_b"],
                        params["wqkv"], params["bqkv"], tm=tm)       # (B*Spad, 3D)
        # TODO(synk): the PyTorch code reshapes to a hard-coded 197 tokens here;
        # we use the actual sequence length (identical behaviour when S == 197).
        x2d = _attn_residual(x2d, qkv2d, num_heads=num_heads,
                             seq_valid=S, seq_pad=Spad)              # (B*Spad, D)
        # --- MLP sub-block: x + MLP(LN(x)), fully fused in one kernel ---
        x2d = _ln_mlp_residual(x2d, params["ln_w"], params["ln_b"],
                               params["w1"], params["b1"],
                               params["w2"], params["b2"], tm=tm)
    x = x2d.reshape(B, Spad, D)
    return x[:, :S]


def encoder_reference(x, params, *, num_heads, num_layers):
    """Pure-JAX reference mirroring the PyTorch module. The MLP matmuls emulate
    the same bf16-input / f32-accumulation mixed precision as the kernel."""
    B, S, D = x.shape
    Dh = D // num_heads
    inv_scale = 1.0 / (Dh ** 0.5)
    w1 = params["w1"].astype(jnp.float32)
    w2 = params["w2"].astype(jnp.float32)
    for _ in range(num_layers):
        xn = _layer_norm_f32(x, params["ln_w"], params["ln_b"], LN_EPS)
        qkv = xn.reshape(B * S, D) @ params["wqkv"] + params["bqkv"]
        qkv = qkv.reshape(B, S, 3, num_heads, Dh).transpose(2, 0, 3, 1, 4)
        q, k, v = qkv[0], qkv[1], qkv[2]
        s = jnp.floor(jnp.einsum("bhqd,bhkd->bhqk", q, k) * inv_scale)
        e = jnp.exp(s - jnp.max(s, axis=-1, keepdims=True))
        p = e / jnp.sum(e, axis=-1, keepdims=True)
        attn = jnp.einsum("bhqk,bhkd->bhqd", p, v)
        x = x + attn.transpose(0, 2, 1, 3).reshape(B, S, D)

        xn = _layer_norm_f32(x, params["ln_w"], params["ln_b"], LN_EPS)
        xb = xn.astype(jnp.bfloat16).astype(jnp.float32)
        h = xb.reshape(B * S, D) @ w1 + params["b1"]
        hb = h.astype(jnp.bfloat16).astype(jnp.float32)
        y = hb @ w2 + params["b2"]
        x = x + y.reshape(B, S, D)
    return x


def init_params(key, D, mlp_dim):
    ks = jax.random.split(key, 8)
    bq = 1.0 / (D ** 0.5)
    b1b = 1.0 / (D ** 0.5)
    b2b = 1.0 / (mlp_dim ** 0.5)
    return dict(
        ln_w=1.0 + 0.05 * jax.random.normal(ks[0], (D,), jnp.float32),
        ln_b=0.05 * jax.random.normal(ks[1], (D,), jnp.float32),
        # Linear weights stored pre-transposed: (in_features, out_features).
        wqkv=jax.random.uniform(ks[2], (D, 3 * D), jnp.float32, -bq, bq),
        bqkv=jax.random.uniform(ks[3], (3 * D,), jnp.float32, -bq, bq),
        w1=jax.random.uniform(ks[4], (D, mlp_dim), jnp.float32, -b1b, b1b
                              ).astype(jnp.bfloat16),
        b1=jax.random.uniform(ks[5], (mlp_dim,), jnp.float32, -b1b, b1b),
        w2=jax.random.uniform(ks[6], (mlp_dim, D), jnp.float32, -b2b, b2b
                              ).astype(jnp.bfloat16),
        b2=jax.random.uniform(ks[7], (D,), jnp.float32, -b2b, b2b),
    )


if __name__ == "__main__":
    # Small shapes consistent with the module (hidden_dim == embedding_dim).
    B, S = 2, 32            # the real ViT uses S=197 (hard-coded in the torch code)
    D = 128                 # lane-dense: multiple of 128
    mlp_dim = 256
    num_heads = 4
    num_layers = 2

    key = jax.random.PRNGKey(0)
    kx, kp, kt = jax.random.split(key, 3)
    x = jax.random.normal(kx, (B, S, D), dtype=jnp.float32)
    params = init_params(kp, D, mlp_dim)

    # --- Unit check of the fused LayerNorm+MLP+residual kernel (tight) --------
    xt = jax.random.normal(kt, (B * S, D), jnp.float32)
    mlp_out = jax.block_until_ready(
        _ln_mlp_residual(xt, params["ln_w"], params["ln_b"],
                         params["w1"], params["b1"], params["w2"], params["b2"]))
    xn = _layer_norm_f32(xt, params["ln_w"], params["ln_b"], LN_EPS)
    xb = xn.astype(jnp.bfloat16).astype(jnp.float32)
    h = xb @ params["w1"].astype(jnp.float32) + params["b1"]
    hb = h.astype(jnp.bfloat16).astype(jnp.float32)
    mlp_ref = xt + hb @ params["w2"].astype(jnp.float32) + params["b2"]
    np.testing.assert_allclose(np.asarray(mlp_out), np.asarray(mlp_ref),
                               atol=1e-2, rtol=1e-2)

    # --- Full Encoder forward -------------------------------------------------
    fwd = jax.jit(functools.partial(encoder_forward, num_heads=num_heads,
                                    num_layers=num_layers, tm=256))
    out = jax.block_until_ready(fwd(x, params))
    ref = jax.block_until_ready(
        encoder_reference(x, params, num_heads=num_heads, num_layers=num_layers))

    assert out.shape == (B, S, D)
    err = jnp.abs(out - ref)
    # The spec's `//` (floor) on attention scores makes the network discontinuous:
    # a score landing within float rounding error of an integer boundary can shift
    # one attention weight.  Use robust criteria (mean error + fraction of large
    # errors) so such rare boundary effects do not mask real correctness bugs.
    assert float(jnp.mean(err)) < 5e-3, f"mean err {float(jnp.mean(err))}"
    frac_bad = float(jnp.mean((err > 2e-2).astype(jnp.float32)))
    assert frac_bad < 2e-2, f"fraction of large errors {frac_bad}"

    print("KERNEL_OK")
</pallas_src>

<mosaic_0001>
module attributes {stable_mosaic.version = 11 : i64} {
  func.func @ln_mlp_residual_kernel(%arg0: i32, %arg1: memref<64x128xf32, #tpu.memory_space<vmem>>, %arg2: memref<1x128xf32, #tpu.memory_space<vmem>>, %arg3: memref<1x128xf32, #tpu.memory_space<vmem>>, %arg4: memref<128x256xbf16, #tpu.memory_space<vmem>>, %arg5: memref<1x256xf32, #tpu.memory_space<vmem>>, %arg6: memref<256x128xbf16, #tpu.memory_space<vmem>>, %arg7: memref<1x128xf32, #tpu.memory_space<vmem>>, %arg8: memref<64x128xf32, #tpu.memory_space<vmem>>) attributes {dimension_semantics = [#tpu.dimension_semantics<parallel>], iteration_bounds = array<i64: 1>, scalar_prefetch = 0 : i64, scratch_operands = 0 : i64, tpu.core_type = #tpu.core_type<tc>, window_params = [{transform_indices = @transform_0, window_bounds = array<i64: 64, 128>}, {pipeline_mode = #tpu.pipeline_mode<synchronous>, transform_indices = @transform_1, window_bounds = array<i64: 1, 128>}, {pipeline_mode = #tpu.pipeline_mode<synchronous>, transform_indices = @transform_2, window_bounds = array<i64: 1, 128>}, {pipeline_mode = #tpu.pipeline_mode<synchronous>, transform_indices = @transform_3, window_bounds = array<i64: 128, 256>}, {pipeline_mode = #tpu.pipeline_mode<synchronous>, transform_indices = @transform_4, window_bounds = array<i64: 1, 256>}, {pipeline_mode = #tpu.pipeline_mode<synchronous>, transform_indices = @transform_5, window_bounds = array<i64: 256, 128>}, {pipeline_mode = #tpu.pipeline_mode<synchronous>, transform_indices = @transform_6, window_bounds = array<i64: 1, 128>}, {transform_indices = @transform_7, window_bounds = array<i64: 64, 128>}]} {
    %c0 = arith.constant 0 : index
    %c0_0 = arith.constant 0 : index
    %0 = vector.load %arg1[%c0, %c0_0] : memref<64x128xf32, #tpu.memory_space<vmem>>, vector<64x128xf32>
    %c0_1 = arith.constant 0 : index
    %c0_2 = arith.constant 0 : index
    %1 = vector.load %arg2[%c0_1, %c0_2] : memref<1x128xf32, #tpu.memory_space<vmem>>, vector<1x128xf32>
    %c0_3 = arith.constant 0 : index
    %c0_4 = arith.constant 0 : index
    %2 = vector.load %arg3[%c0_3, %c0_4] : memref<1x128xf32, #tpu.memory_space<vmem>>, vector<1x128xf32>
    %cst = arith.constant dense<0.000000e+00> : vector<64xf32>
    %3 = vector.multi_reduction <add>, %0, %cst [1] : vector<64x128xf32> to vector<64xf32>
    %4 = vector.shape_cast %3 : vector<64xf32> to vector<64x1xf32>
    %cst_5 = arith.constant 1.280000e+02 : f32
    %5 = vector.broadcast %cst_5 : f32 to vector<64x1xf32>
    %6 = arith.divf %4, %5 : vector<64x1xf32>
    %7 = vector.broadcast %6 : vector<64x1xf32> to vector<64x128xf32>
    %8 = arith.subf %0, %7 : vector<64x128xf32>
    %9 = arith.mulf %8, %8 : vector<64x128xf32>
    %cst_6 = arith.constant dense<0.000000e+00> : vector<64xf32>
    %10 = vector.multi_reduction <add>, %9, %cst_6 [1] : vector<64x128xf32> to vector<64xf32>
    %11 = vector.shape_cast %10 : vector<64xf32> to vector<64x1xf32>
    %cst_7 = arith.constant 1.280000e+02 : f32
    %12 = vector.broadcast %cst_7 : f32 to vector<64x1xf32>
    %13 = arith.divf %11, %12 : vector<64x1xf32>
    %cst_8 = arith.constant 9.99999974E-6 : f32
    %14 = vector.broadcast %cst_8 : f32 to vector<64x1xf32>
    %15 = arith.addf %13, %14 : vector<64x1xf32>
    %16 = math.rsqrt %15 : vector<64x1xf32>
    %17 = vector.broadcast %16 : vector<64x1xf32> to vector<64x128xf32>
    %18 = arith.mulf %8, %17 : vector<64x128xf32>
    %19 = vector.broadcast %1 : vector<1x128xf32> to vector<64x128xf32>
    %20 = arith.mulf %18, %19 : vector<64x128xf32>
    %21 = vector.broadcast %2 : vector<1x128xf32> to vector<64x128xf32>
    %22 = arith.addf %20, %21 : vector<64x128xf32>
    %23 = arith.truncf %22 : vector<64x128xf32> to vector<64x128xbf16>
    %c0_9 = arith.constant 0 : index
    %c0_10 = arith.constant 0 : index
    %24 = vector.load %arg4[%c0_9, %c0_10] : memref<128x256xbf16, #tpu.memory_space<vmem>>, vector<128x256xbf16>
    %cst_11 = arith.constant dense<0.000000e+00> : vector<64x256xf32>
    %25 = tpu.matmul %23, %24, %cst_11 {dimension_numbers = #tpu.dot_dimension_numbers<[1], [0], [0], [1], [0, 0, 1, 1], [], []>} : vector<64x128xbf16>, vector<128x256xbf16>, vector<64x256xf32> -> vector<64x256xf32>
    %c0_12 = arith.constant 0 : index
    %c0_13 = arith.constant 0 : index
    %26 = vector.load %arg5[%c0_12, %c0_13] : memref<1x256xf32, #tpu.memory_space<vmem>>, vector<1x256xf32>
    %27 = vector.broadcast %26 : vector<1x256xf32> to vector<64x256xf32>
    %28 = arith.addf %25, %27 : vector<64x256xf32>
    %29 = arith.truncf %28 : vector<64x256xf32> to vector<64x256xbf16>
    %c0_14 = arith.constant 0 : index
    %c0_15 = arith.constant 0 : index
    %30 = vector.load %arg6[%c0_14, %c0_15] : memref<256x128xbf16, #tpu.memory_space<vmem>>, vector<256x128xbf16>
    %cst_16 = arith.constant dense<0.000000e+00> : vector<64x128xf32>
    %31 = tpu.matmul %29, %30, %cst_16 {dimension_numbers = #tpu.dot_dimension_numbers<[1], [0], [0], [1], [0, 0, 1, 1], [], []>} : vector<64x256xbf16>, vector<256x128xbf16>, vector<64x128xf32> -> vector<64x128xf32>
    %c0_17 = arith.constant 0 : index
    %c0_18 = arith.constant 0 : index
    %32 = vector.load %arg7[%c0_17, %c0_18] : memref<1x128xf32, #tpu.memory_space<vmem>>, vector<1x128xf32>
    %33 = vector.broadcast %32 : vector<1x128xf32> to vector<64x128xf32>
    %34 = arith.addf %31, %33 : vector<64x128xf32>
    %35 = arith.addf %0, %34 : vector<64x128xf32>
    %c0_19 = arith.constant 0 : index
    %c0_20 = arith.constant 0 : index
    %36 = vector.load %arg8[%c0_19, %c0_20] : memref<64x128xf32, #tpu.memory_space<vmem>>, vector<64x128xf32>
    tpu.vector_store %arg8[%c0_19, %c0_20], %35 {strides = array<i32>} : memref<64x128xf32, #tpu.memory_space<vmem>>, vector<64x128xf32>,
    return
  }
  func.func @transform_0(%arg0: i32) -> (i32, i32) {
    %c0_i32 = arith.constant 0 : i32
    %c0_i32_0 = arith.constant 0 : i32
    return %arg0, %c0_i32 : i32, i32
  }
  func.func @transform_1(%arg0: i32) -> (i32, i32) {
    %c0_i32 = arith.constant 0 : i32
    %c0_i32_0 = arith.constant 0 : i32
    %c0_i32_1 = arith.constant 0 : i32
    return %c0_i32, %c0_i32_0 : i32, i32
  }
  func.func @transform_2(%arg0: i32) -> (i32, i32) {
    %c0_i32 = arith.constant 0 : i32
    %c0_i32_0 = arith.constant 0 : i32
    %c0_i32_1 = arith.constant 0 : i32
    return %c0_i32, %c0_i32_0 : i32, i32
  }
  func.func @transform_3(%arg0: i32) -> (i32, i32) {
    %c0_i32 = arith.constant 0 : i32
    %c0_i32_0 = arith.constant 0 : i32
    %c0_i32_1 = arith.constant 0 : i32
    return %c0_i32, %c0_i32_0 : i32, i32
  }
  func.func @transform_4(%arg0: i32) -> (i32, i32) {
    %c0_i32 = arith.constant 0 : i32
    %c0_i32_0 = arith.constant 0 : i32
    %c0_i32_1 = arith.constant 0 : i32
    return %c0_i32, %c0_i32_0 : i32, i32
  }
  func.func @transform_5(%arg0: i32) -> (i32, i32) {
    %c0_i32 = arith.constant 0 : i32
    %c0_i32_0 = arith.constant 0 : i32
    %c0_i32_1 = arith.constant 0 : i32
    return %c0_i32, %c0_i32_0 : i32, i32
  }
  func.func @transform_6(%arg0: i32) -> (i32, i32) {
    %c0_i32 = arith.constant 0 : i32
    %c0_i32_0 = arith.constant 0 : i32
    %c0_i32_1 = arith.constant 0 : i32
    return %c0_i32, %c0_i32_0 : i32, i32
  }
  func.func @transform_7(%arg0: i32) -> (i32, i32) {
    %c0_i32 = arith.constant 0 : i32
    %c0_i32_0 = arith.constant 0 : i32
    return %arg0, %c0_i32 : i32, i32
  }
}

</mosaic_0001>

<llo_original>
// kernel: tpu_custom_call.1
$region0: #{tpu_custom_call.1}
  #allocation0 [shape = 'u32[]', space=smem, size = 0x4, offset = 0x4, fixed_abs, tag = 'smem constant byte address 0x4 - core index']
  #allocation1 [shape = 'u32[144,128]{1,0:T(1,128)}', space=vmem, size = 0x12000, scoped, tag = 'internal scratch']
  %s0 = inlined_call_operand.hbm [shape: f32[64,128], index: 0, kind: input, shape index: {}]
  %s1 = inlined_call_operand.vmem [shape: f32[1,128], index: 1, kind: input, shape index: {}]
  %s2 = inlined_call_operand.vmem [shape: f32[1,128], index: 2, kind: input, shape index: {}]
  %s3 = inlined_call_operand.hbm [shape: bf16[128,256], index: 3, kind: input, shape index: {}]
  %s4 = inlined_call_operand.vmem [shape: f32[1,256], index: 4, kind: input, shape index: {}]
  %s5 = inlined_call_operand.hbm [shape: bf16[256,128], index: 5, kind: input, shape index: {}]
  %s6 = inlined_call_operand.vmem [shape: f32[1,128], index: 6, kind: input, shape index: {}]
  %s7 = inlined_call_operand.hbm [shape: f32[64,128], index: 7, kind: output, shape index: {}]
  %s8 = sld [smem:[#allocation0]]
  $region50: #{tpu_custom_call.1} parent=0
    _
  %s10 = ssub.s32 1, %s8
  %s11 = scalar_select 0, %s10, %s8
  $region1: #{tpu_custom_call.1} parent=0
    #allocation2 [shape = 'u8[32768]{0}', space=vmem, size = 0x8000, scoped, tag = 'input window, operand 0, single buffered']
    #allocation3 [shape = 's32[1]{0}', space=sflag, size = 0x4, scoped, tag = 'scoped memory for tpu_custom_call.1']
    #allocation4 [shape = 's32[1]{0}', space=sflag, size = 0x4, scoped, tag = 'scoped memory for tpu_custom_call.1']
    #allocation5 [shape = 'u8[65536]{0}', space=vmem, size = 0x10000, scoped, tag = 'input window, operand 3, single buffered']
    #allocation6 [shape = 's32[1]{0}', space=sflag, size = 0x4, scoped, tag = 'scoped memory for tpu_custom_call.1']
    #allocation7 [shape = 'u8[65536]{0}', space=vmem, size = 0x10000, scoped, tag = 'input window, operand 5, single buffered']
    #allocation8 [shape = 'u8[32768]{0}', space=vmem, size = 0x8000, scoped, tag = 'output window, operand 0, single buffered']
    %12 = vsyncpa [#allocation3], 0
    %13 = vsyncpa [#allocation6], 0
    %14 = vsyncpa [#allocation4], 0
    // Predicated region
    $region2: #{tpu_custom_call.1} parent=1 // pred_check
      _
    $region3: #{tpu_custom_call.1} parent=1 // pred_check_branch
      %16 = sbr.rel (0) target = $region5
    $region4: #{tpu_custom_call.1} parent=1 // pred_region
      %s18 = ssub.s32 1024, 1024
      %19 = vsyncadd [#allocation3], %s18
      %s20 = sshll.u32 [#allocation2], 4
      %s21 = int_to_ptr.vmem [resolvable:$true] %s20
      %26 = dma.hbm_to_vmem [thread:$0]  %s0, 1024, %s21, [#allocation3], 128, 128, 8
    $region5: #{tpu_custom_call.1} parent=1 // pred_fallthru
      _
    // Predicated region
    $region6: #{tpu_custom_call.1} parent=1 // pred_check
      _
    $region7: #{tpu_custom_call.1} parent=1 // pred_check_branch
      %28 = sbr.rel (0) target = $region9
    $region8: #{tpu_custom_call.1} parent=1 // pred_region
      _
    $region9: #{tpu_custom_call.1} parent=1 // pred_fallthru
      _
    // Predicated region
    $region10: #{tpu_custom_call.1} parent=1 // pred_check
      _
    $region11: #{tpu_custom_call.1} parent=1 // pred_check_branch
      %30 = sbr.rel (0) target = $region13
    $region12: #{tpu_custom_call.1} parent=1 // pred_region
      _
    $region13: #{tpu_custom_call.1} parent=1 // pred_fallthru
      _
    // Predicated region
    $region14: #{tpu_custom_call.1} parent=1 // pred_check
      _
    $region15: #{tpu_custom_call.1} parent=1 // pred_check_branch
      %32 = sbr.rel (0) target = $region17
    $region16: #{tpu_custom_call.1} parent=1 // pred_region
      %s34 = ssub.s32 2048, 2048
      %35 = vsyncadd [#allocation6], %s34
      %s36 = sshll.u32 [#allocation5], 4
      %s37 = int_to_ptr.vmem [resolvable:$true] %s36
      %42 = dma.hbm_to_vmem [thread:$0]  %s3, 2048, %s37, [#allocation6], 128, 128, 8
    $region17: #{tpu_custom_call.1} parent=1 // pred_fallthru
      _
    // Predicated region
    $region18: #{tpu_custom_call.1} parent=1 // pred_check
      _
    $region19: #{tpu_custom_call.1} parent=1 // pred_check_branch
      %44 = sbr.rel (0) target = $region21
    $region20: #{tpu_custom_call.1} parent=1 // pred_region
      _
    $region21: #{tpu_custom_call.1} parent=1 // pred_fallthru
      _
    // Predicated region
    $region22: #{tpu_custom_call.1} parent=1 // pred_check
      _
    $region23: #{tpu_custom_call.1} parent=1 // pred_check_branch
      %46 = sbr.rel (0) target = $region25
    $region24: #{tpu_custom_call.1} parent=1 // pred_region
      %s48 = ssub.s32 2048, 2048
      %49 = vsyncadd [#allocation6], %s48
      %s50 = sshll.u32 [#allocation7], 4
      %s51 = int_to_ptr.vmem [resolvable:$true] %s50
      %56 = dma.hbm_to_vmem [thread:$0]  %s5, 2048, %s51, [#allocation6], 64, 64, 4
    $region25: #{tpu_custom_call.1} parent=1 // pred_fallthru
      _
    // Predicated region
    $region26: #{tpu_custom_call.1} parent=1 // pred_check
      _
    $region27: #{tpu_custom_call.1} parent=1 // pred_check_branch
      %58 = sbr.rel (0) target = $region29
    $region28: #{tpu_custom_call.1} parent=1 // pred_region
      _
    $region29: #{tpu_custom_call.1} parent=1 // pred_fallthru
      _
    // Predicated region
    $region30: #{tpu_custom_call.1} parent=1 // pred_check
      _
    $region31: #{tpu_custom_call.1} parent=1 // pred_check_branch
      %60 = sbr.rel (0) target = $region33
    $region32: #{tpu_custom_call.1} parent=1 // pred_region
      %61 = dma.done [#allocation3], 1024
    $region33: #{tpu_custom_call.1} parent=1 // pred_fallthru
      _
    // Predicated region
    $region34: #{tpu_custom_call.1} parent=1 // pred_check
      _
    $region35: #{tpu_custom_call.1} parent=1 // pred_check_branch
      %63 = sbr.rel (0) target = $region37
    $region36: #{tpu_custom_call.1} parent=1 // pred_region
      %64 = dma.done [#allocation6], 2048
    $region37: #{tpu_custom_call.1} parent=1 // pred_fallthru
      _
    // Predicated region
    $region38: #{tpu_custom_call.1} parent=1 // pred_check
      _
    $region39: #{tpu_custom_call.1} parent=1 // pred_check_branch
      %66 = sbr.rel (0) target = $region41
    $region40: #{tpu_custom_call.1} parent=1 // pred_region
      %67 = dma.done [#allocation6], 2048
    $region41: #{tpu_custom_call.1} parent=1 // pred_fallthru
      _
    %v69 = vld [vmem:[#allocation2] sm:$0xff]
    %v70 = vld [vmem:[#allocation2 + $0x8] sm:$0xff]
    %v71 = vld [vmem:[#allocation2 + $0x10] sm:$0xff]
    %v72 = vld [vmem:[#allocation2 + $0x18] sm:$0xff]
    %v73 = vld [vmem:[#allocation2 + $0x20] sm:$0xff]
    %v74 = vld [vmem:[#allocation2 + $0x28] sm:$0xff]
    %v75 = vld [vmem:[#allocation2 + $0x30] sm:$0xff]
    %v76 = vld [vmem:[#allocation2 + $0x38] sm:$0xff]
    %v77 = vld [vmem:[%s1] sm:$0x1]
    %v78 = vld [vmem:[%s2] sm:$0x1]
    %79 = vadd.xlane.f32.xlu0 %v69
    %v80 = vpop.xlane.xlu0 %79
    %81 = vadd.xlane.f32.xlu0 %v70
    %v82 = vpop.xlane.xlu0 %81
    %83 = vadd.xlane.f32.xlu0 %v71
    %v84 = vpop.xlane.xlu0 %83
    %85 = vadd.xlane.f32.xlu0 %v72
    %v86 = vpop.xlane.xlu0 %85
    %87 = vadd.xlane.f32.xlu0 %v73
    %v88 = vpop.xlane.xlu0 %87
    %89 = vadd.xlane.f32.xlu0 %v74
    %v90 = vpop.xlane.xlu0 %89
    %91 = vadd.xlane.f32.xlu0 %v75
    %v92 = vpop.xlane.xlu0 %91
    %93 = vadd.xlane.f32.xlu0 %v76
    %v94 = vpop.xlane.xlu0 %93
    %v95 = vrcp.pop 128.0
    %v96 = vmul.f32 %v80, %v95
    %v97 = vmul.f32 %v82, %v95
    %v98 = vmul.f32 %v84, %v95
    %v99 = vmul.f32 %v86, %v95
    %v100 = vmul.f32 %v88, %v95
    %v101 = vmul.f32 %v90, %v95
    %v102 = vmul.f32 %v92, %v95
    %v103 = vmul.f32 %v94, %v95
    %v104 = vsub.f32 %v69, %v96
    %v105 = vsub.f32 %v70, %v97
    %v106 = vsub.f32 %v71, %v98
    %v107 = vsub.f32 %v72, %v99
    %v108 = vsub.f32 %v73, %v100
    %v109 = vsub.f32 %v74, %v101
    %v110 = vsub.f32 %v75, %v102
    %v111 = vsub.f32 %v76, %v103
    %v112 = vmul.f32 %v104, %v104
    %v113 = vmul.f32 %v105, %v105
    %v114 = vmul.f32 %v106, %v106
    %v115 = vmul.f32 %v107, %v107
    %v116 = vmul.f32 %v108, %v108
    %v117 = vmul.f32 %v109, %v109
    %v118 = vmul.f32 %v110, %v110
    %v119 = vmul.f32 %v111, %v111
    %120 = vadd.xlane.f32.xlu0 %v112
    %v121 = vpop.xlane.xlu0 %120
    %122 = vadd.xlane.f32.xlu0 %v113
    %v123 = vpop.xlane.xlu0 %122
    %124 = vadd.xlane.f32.xlu0 %v114
    %v125 = vpop.xlane.xlu0 %124
    %126 = vadd.xlane.f32.xlu0 %v115
    %v127 = vpop.xlane.xlu0 %126
    %128 = vadd.xlane.f32.xlu0 %v116
    %v129 = vpop.xlane.xlu0 %128
    %130 = vadd.xlane.f32.xlu0 %v117
    %v131 = vpop.xlane.xlu0 %130
    %132 = vadd.xlane.f32.xlu0 %v118
    %v133 = vpop.xlane.xlu0 %132
    %134 = vadd.xlane.f32.xlu0 %v119
    %v135 = vpop.xlane.xlu0 %134
    %v136 = vmul.f32 %v121, %v95
    %v137 = vmul.f32 %v123, %v95
    %v138 = vmul.f32 %v125, %v95
    %v139 = vmul.f32 %v127, %v95
    %v140 = vmul.f32 %v129, %v95
    %v141 = vmul.f32 %v131, %v95
    %v142 = vmul.f32 %v133, %v95
    %v143 = vmul.f32 %v135, %v95
    %v144 = vadd.f32 %v136, 1e-05
    %v145 = vadd.f32 %v137, 1e-05
    %v146 = vadd.f32 %v138, 1e-05
    %v147 = vadd.f32 %v139, 1e-05
    %v148 = vadd.f32 %v140, 1e-05
    %v149 = vadd.f32 %v141, 1e-05
    %v150 = vadd.f32 %v142, 1e-05
    %v151 = vadd.f32 %v143, 1e-05
    %v152 = vrsqrt.pop %v144
    %v153 = vrsqrt.pop %v145
    %v154 = vrsqrt.pop %v146
    %v155 = vrsqrt.pop %v147
    %v156 = vrsqrt.pop %v148
    %v157 = vrsqrt.pop %v149
    %v158 = vrsqrt.pop %v150
    %v159 = vrsqrt.pop %v151
    %v160 = vmul.f32 %v104, %v152
    %v161 = vmul.f32 %v105, %v153
    %v162 = vmul.f32 %v106, %v154
    %v163 = vmul.f32 %v107, %v155
    %v164 = vmul.f32 %v108, %v156
    %v165 = vmul.f32 %v109, %v157
    %v166 = vmul.f32 %v110, %v158
    %v167 = vmul.f32 %v111, %v159
    %v169 = vlaneseq
    %v170 = vshrl.u32 %v169, 7
    %v171 = vsub.s32 0, %v170
    %v172 = vrot.slane %v77, %v171
    %v174 = vmul.f32 %v160, %v172
    %v175 = vmul.f32 %v161, %v172
    %v176 = vmul.f32 %v162, %v172
    %v177 = vmul.f32 %v163, %v172
    %v178 = vmul.f32 %v164, %v172
    %v179 = vmul.f32 %v165, %v172
    %v180 = vmul.f32 %v166, %v172
    %v181 = vmul.f32 %v167, %v172
    %v183 = vlaneseq
    %v184 = vshrl.u32 %v183, 7
    %v185 = vsub.s32 0, %v184
    %v186 = vrot.slane %v78, %v185
    %v188 = vadd.f32 %v174, %v186
    %v189 = vadd.f32 %v175, %v186
    %v190 = vadd.f32 %v176, %v186
    %v191 = vadd.f32 %v177, %v186
    %v192 = vadd.f32 %v178, %v186
    %v193 = vadd.f32 %v179, %v186
    %v194 = vadd.f32 %v180, %v186
    %v195 = vadd.f32 %v181, %v186
    %v196 = vpack.c.bf16 %v189, %v188
    %v197 = vpack.c.bf16 %v191, %v190
    %v198 = vpack.c.bf16 %v193, %v192
    %v199 = vpack.c.bf16 %v195, %v194
    %v200 = vld [vmem:[#allocation5] sm:$0xff]
    %v201 = vld [vmem:[#allocation5 + $0x8] sm:$0xff]
    %v202 = vld [vmem:[#allocation5 + $0x10] sm:$0xff]
    %v203 = vld [vmem:[#allocation5 + $0x18] sm:$0xff]
    %v204 = vld [vmem:[#allocation5 + $0x20] sm:$0xff]
    %v205 = vld [vmem:[#allocation5 + $0x28] sm:$0xff]
    %v206 = vld [vmem:[#allocation5 + $0x30] sm:$0xff]
    %v207 = vld [vmem:[#allocation5 + $0x38] sm:$0xff]
    %v208 = vld [vmem:[#allocation5 + $0x40] sm:$0xff]
    %v209 = vld [vmem:[#allocation5 + $0x48] sm:$0xff]
    %v210 = vld [vmem:[#allocation5 + $0x50] sm:$0xff]
    %v211 = vld [vmem:[#allocation5 + $0x58] sm:$0xff]
    %v212 = vld [vmem:[#allocation5 + $0x60] sm:$0xff]
    %v213 = vld [vmem:[#allocation5 + $0x68] sm:$0xff]
    %v214 = vld [vmem:[#allocation5 + $0x70] sm:$0xff]
    %v215 = vld [vmem:[#allocation5 + $0x78] sm:$0xff]
    %v216 = vld [vmem:[%s4] sm:$0x3]
    %v218 = vlaneseq
    %v219 = vshrl.u32 %v218, 7
    %v220 = vsub.s32 0, %v219
    %v221 = vrot.slane %v216, %v220
    %v222 = vlaneseq
    %v223 = vshrl.u32 %v222, 7
    %v224 = vsub.s32 1, %v223
    %v225 = vrot.slane %v216, %v224
    %v244 = vunpack.c.l.b16 %v200
    %v245 = vunpack.c.h.b16 %v200
    %v246 = vunpack.c.l.b16 %v201
    %v247 = vunpack.c.h.b16 %v201
    %v248 = vunpack.c.l.b16 %v202
    %v249 = vunpack.c.h.b16 %v202
    %v250 = vunpack.c.l.b16 %v203
    %v251 = vunpack.c.h.b16 %v203
    %v252 = vunpack.c.l.b16 %v204
    %v253 = vunpack.c.h.b16 %v204
    %v254 = vunpack.c.l.b16 %v205
    %v255 = vunpack.c.h.b16 %v205
    %v256 = vunpack.c.l.b16 %v206
    %v257 = vunpack.c.h.b16 %v206
    %v258 = vunpack.c.l.b16 %v207
    %v259 = vunpack.c.h.b16 %v207
    %v260 = vunpack.c.l.b16 %v208
    %v261 = vunpack.c.h.b16 %v208
    %v262 = vunpack.c.l.b16 %v209
    %v263 = vunpack.c.h.b16 %v209
    %v264 = vunpack.c.l.b16 %v210
    %v265 = vunpack.c.h.b16 %v210
    %v266 = vunpack.c.l.b16 %v211
    %v267 = vunpack.c.h.b16 %v211
    %v268 = vunpack.c.l.b16 %v212
    %v269 = vunpack.c.h.b16 %v212
    %v270 = vunpack.c.l.b16 %v213
    %v271 = vunpack.c.h.b16 %v213
    %v272 = vunpack.c.l.b16 %v214
    %v273 = vunpack.c.h.b16 %v214
    %v274 = vunpack.c.l.b16 %v215
    %v275 = vunpack.c.h.b16 %v215
    %v276 = vpack.c.b16 %v246, %v244
    %v277 = vpack.c.b16 %v247, %v245
    %v278 = vpack.c.b16 %v250, %v248
    %v279 = vpack.c.b16 %v251, %v249
    %v280 = vpack.c.b16 %v254, %v252
    %v281 = vpack.c.b16 %v255, %v253
    %v282 = vpack.c.b16 %v258, %v256
    %v283 = vpack.c.b16 %v259, %v257
    %v284 = vpack.c.b16 %v262, %v260
    %v285 = vpack.c.b16 %v263, %v261
    %v286 = vpack.c.b16 %v266, %v264
    %v287 = vpack.c.b16 %v267, %v265
    %v288 = vpack.c.b16 %v270, %v268
    %v289 = vpack.c.b16 %v271, %v269
    %v290 = vpack.c.b16 %v274, %v272
    %v291 = vpack.c.b16 %v275, %v273
    %308 = vmatprep.subr.bf16.mxu0 %v277
    %309 = vmatpush1.bf16.msra.mxu0 %v276
    %310 = vmatprep.subr.bf16.mxu0 %v279
    %311 = vmatpush1.bf16.msra.mxu0 %v278
    %312 = vmatprep.subr.bf16.mxu0 %v281
    %313 = vmatpush1.bf16.msra.mxu0 %v280
    %314 = vmatprep.subr.bf16.mxu0 %v283
    %315 = vmatpush1.bf16.msra.mxu0 %v282
    %316 = vmatprep.subr.bf16.mxu0 %v285
    %317 = vmatpush1.bf16.msra.mxu0 %v284
    %318 = vmatprep.subr.bf16.mxu0 %v287
    %319 = vmatpush1.bf16.msra.mxu0 %v286
    %320 = vmatprep.subr.bf16.mxu0 %v289
    %321 = vmatpush1.bf16.msra.mxu0 %v288
    %322 = vmatprep.subr.bf16.mxu0 %v291
    %323 = vmatpush1.bf16.msra.mxu0 %v290
    %324 = vmatprep.subr.bf16.mxu0 0
    %325 = vmatpush1.bf16.msra.mxu0 0
    %326 = vmatprep.subr.bf16.mxu0 0
    %327 = vmatpush1.bf16.msra.mxu0 0
    %328 = vmatprep.subr.bf16.mxu0 0
    %329 = vmatpush1.bf16.msra.mxu0 0
    %330 = vmatprep.subr.bf16.mxu0 0
    %331 = vmatpush1.bf16.msra.mxu0 0
    %332 = vmatprep.subr.bf16.mxu0 0
    %333 = vmatpush1.bf16.msra.mxu0 0
    %334 = vmatprep.subr.bf16.mxu0 0
    %335 = vmatpush1.bf16.msra.mxu0 0
    %336 = vmatprep.subr.bf16.mxu0 0
    %337 = vmatpush1.bf16.msra.mxu0 0
    %338 = vmatprep.subr.bf16.mxu0 0
    %339 = vmatpush1.bf16.msra.mxu0 0
    %340 = vmatprep.mubr.bf16.mxu0 0
    %341 = vmatmul.mubr.bf16.gmra.mrb[0].mxu0 %v196
    %v342 = vpop.f32.mrb[0].mxu0
    %v343 = vadd.f32 %v221, %v342
    %v344 = vpop.f32.mrb[0].mxu0
    %v345 = vadd.f32 %v225, %v344
    %v346 = vpop.f32.mrb[0].mxu0
    %v347 = vadd.f32 %v221, %v346
    %v348 = vpop.f32.mrb[0].mxu0
    %v349 = vadd.f32 %v225, %v348
    %350 = vmatprep.mubr.bf16.mxu0 0
    %351 = vmatmul.mubr.bf16.gmra.mrb[0].mxu0 %v197
    %v352 = vpop.f32.mrb[0].mxu0
    %v353 = vadd.f32 %v221, %v352
    %v354 = vpop.f32.mrb[0].mxu0
    %v355 = vadd.f32 %v225, %v354
    %v356 = vpop.f32.mrb[0].mxu0
    %v357 = vadd.f32 %v221, %v356
    %v358 = vpop.f32.mrb[0].mxu0
    %v359 = vadd.f32 %v225, %v358
    %360 = vmatprep.mubr.bf16.mxu0 0
    %361 = vmatmul.mubr.bf16.gmra.mrb[0].mxu0 %v198
    %v362 = vpop.f32.mrb[0].mxu0
    %v363 = vadd.f32 %v221, %v362
    %v364 = vpop.f32.mrb[0].mxu0
    %v365 = vadd.f32 %v225, %v364
    %v366 = vpop.f32.mrb[0].mxu0
    %v367 = vadd.f32 %v221, %v366
    %v368 = vpop.f32.mrb[0].mxu0
    %v369 = vadd.f32 %v225, %v368
    %370 = vmatprep.mubr.bf16.mxu0 0
    %371 = vmatmul.mubr.bf16.gmra.mrb[0].mxu0 %v199
    %v372 = vpop.f32.mrb[0].mxu0
    %v373 = vadd.f32 %v221, %v372
    %v374 = vpop.f32.mrb[0].mxu0
    %v375 = vadd.f32 %v225, %v374
    %v376 = vpop.f32.mrb[0].mxu0
    %v377 = vadd.f32 %v221, %v376
    %v378 = vpop.f32.mrb[0].mxu0
    %v379 = vadd.f32 %v225, %v378
    %380 = vdwg.mxu0
    %v381 = vpack.c.bf16 %v347, %v343
    %v382 = vpack.c.bf16 %v349, %v345
    %v383 = vpack.c.bf16 %v357, %v353
    %v384 = vpack.c.bf16 %v359, %v355
    %v385 = vpack.c.bf16 %v367, %v363
    %v386 = vpack.c.bf16 %v369, %v365
    %v387 = vpack.c.bf16 %v377, %v373
    %v388 = vpack.c.bf16 %v379, %v375
    %v389 = vld [vmem:[#allocation7] sm:$0xf]
    %v390 = vld [vmem:[#allocation7 + $0x4] sm:$0xf]
    %v391 = vld [vmem:[#allocation7 + $0x8] sm:$0xf]
    %v392 = vld [vmem:[#allocation7 + $0xc] sm:$0xf]
    %v393 = vld [vmem:[#allocation7 + $0x10] sm:$0xf]
    %v394 = vld [vmem:[#allocation7 + $0x14] sm:$0xf]
    %v395 = vld [vmem:[#allocation7 + $0x18] sm:$0xf]
    %v396 = vld [vmem:[#allocation7 + $0x1c] sm:$0xf]
    %v397 = vld [vmem:[#allocation7 + $0x20] sm:$0xf]
    %v398 = vld [vmem:[#allocation7 + $0x24] sm:$0xf]
    %v399 = vld [vmem:[#allocation7 + $0x28] sm:$0xf]
    %v400 = vld [vmem:[#allocation7 + $0x2c] sm:$0xf]
    %v401 = vld [vmem:[#allocation7 + $0x30] sm:$0xf]
    %v402 = vld [vmem:[#allocation7 + $0x34] sm:$0xf]
    %v403 = vld [vmem:[#allocation7 + $0x38] sm:$0xf]
    %v404 = vld [vmem:[#allocation7 + $0x3c] sm:$0xf]
    %v405 = vld [vmem:[#allocation7 + $0x40] sm:$0xf]
    %v406 = vld [vmem:[#allocation7 + $0x44] sm:$0xf]
    %v407 = vld [vmem:[#allocation7 + $0x48] sm:$0xf]
    %v408 = vld [vmem:[#allocation7 + $0x4c] sm:$0xf]
    %v409 = vld [vmem:[#allocation7 + $0x50] sm:$0xf]
    %v410 = vld [vmem:[#allocation7 + $0x54] sm:$0xf]
    %v411 = vld [vmem:[#allocation7 + $0x58] sm:$0xf]
    %v412 = vld [vmem:[#allocation7 + $0x5c] sm:$0xf]
    %v413 = vld [vmem:[#allocation7 + $0x60] sm:$0xf]
    %v414 = vld [vmem:[#allocation7 + $0x64] sm:$0xf]
    %v415 = vld [vmem:[#allocation7 + $0x68] sm:$0xf]
    %v416 = vld [vmem:[#allocation7 + $0x6c] sm:$0xf]
    %v417 = vld [vmem:[#allocation7 + $0x70] sm:$0xf]
    %v418 = vld [vmem:[#allocation7 + $0x74] sm:$0xf]
    %v419 = vld [vmem:[#allocation7 + $0x78] sm:$0xf]
    %v420 = vld [vmem:[#allocation7 + $0x7c] sm:$0xf]
    %v421 = vld [vmem:[%s6] sm:$0x1]
    %v423 = vlaneseq
    %v424 = vshrl.u32 %v423, 7
    %v425 = vsub.s32 0, %v424
    %v426 = vrot.slane %v421, %v425
    %v460 = vunpack.c.l.b16 %v389
    %v461 = vunpack.c.l.b16 %v390
    %v462 = vunpack.c.l.b16 %v391
    %v463 = vunpack.c.l.b16 %v392
    %v464 = vunpack.c.l.b16 %v393
    %v465 = vunpack.c.l.b16 %v394
    %v466 = vunpack.c.l.b16 %v395
    %v467 = vunpack.c.l.b16 %v396
    %v468 = vunpack.c.l.b16 %v397
    %v469 = vunpack.c.l.b16 %v398
    %v470 = vunpack.c.l.b16 %v399
    %v471 = vunpack.c.l.b16 %v400
    %v472 = vunpack.c.l.b16 %v401
    %v473 = vunpack.c.l.b16 %v402
    %v474 = vunpack.c.l.b16 %v403
    %v475 = vunpack.c.l.b16 %v404
    %v476 = vunpack.c.l.b16 %v405
    %v477 = vunpack.c.l.b16 %v406
    %v478 = vunpack.c.l.b16 %v407
    %v479 = vunpack.c.l.b16 %v408
    %v480 = vunpack.c.l.b16 %v409
    %v481 = vunpack.c.l.b16 %v410
    %v482 = vunpack.c.l.b16 %v411
    %v483 = vunpack.c.l.b16 %v412
    %v484 = vunpack.c.l.b16 %v413
    %v485 = vunpack.c.l.b16 %v414
    %v486 = vunpack.c.l.b16 %v415
    %v487 = vunpack.c.l.b16 %v416
    %v488 = vunpack.c.l.b16 %v417
    %v489 = vunpack.c.l.b16 %v418
    %v490 = vunpack.c.l.b16 %v419
    %v491 = vunpack.c.l.b16 %v420
    %v492 = vpack.c.b16 %v461, %v460
    %v493 = vpack.c.b16 %v463, %v462
    %v494 = vpack.c.b16 %v465, %v464
    %v495 = vpack.c.b16 %v467, %v466
    %v496 = vpack.c.b16 %v469, %v468
    %v497 = vpack.c.b16 %v471, %v470
    %v498 = vpack.c.b16 %v473, %v472
    %v499 = vpack.c.b16 %v475, %v474
    %v500 = vpack.c.b16 %v477, %v476
    %v501 = vpack.c.b16 %v479, %v478
    %v502 = vpack.c.b16 %v481, %v480
    %v503 = vpack.c.b16 %v483, %v482
    %v504 = vpack.c.b16 %v485, %v484
    %v505 = vpack.c.b16 %v487, %v486
    %v506 = vpack.c.b16 %v489, %v488
    %v507 = vpack.c.b16 %v491, %v490
    %524 = vmatprep.subr.bf16.mxu0 0
    %525 = vmatpush1.bf16.msra.mxu0 %v492
    %526 = vmatprep.subr.bf16.mxu0 0
    %527 = vmatpush1.bf16.msra.mxu0 %v493
    %528 = vmatprep.subr.bf16.mxu0 0
    %529 = vmatpush1.bf16.msra.mxu0 %v494
    %530 = vmatprep.subr.bf16.mxu0 0
    %531 = vmatpush1.bf16.msra.mxu0 %v495
    %532 = vmatprep.subr.bf16.mxu0 0
    %533 = vmatpush1.bf16.msra.mxu0 %v496
    %534 = vmatprep.subr.bf16.mxu0 0
    %535 = vmatpush1.bf16.msra.mxu0 %v497
    %536 = vmatprep.subr.bf16.mxu0 0
    %537 = vmatpush1.bf16.msra.mxu0 %v498
    %538 = vmatprep.subr.bf16.mxu0 0
    %539 = vmatpush1.bf16.msra.mxu0 %v499
    %540 = vmatprep.subr.bf16.mxu0 0
    %541 = vmatpush1.bf16.msra.mxu0 %v500
    %542 = vmatprep.subr.bf16.mxu0 0
    %543 = vmatpush1.bf16.msra.mxu0 %v501
    %544 = vmatprep.subr.bf16.mxu0 0
    %545 = vmatpush1.bf16.msra.mxu0 %v502
    %546 = vmatprep.subr.bf16.mxu0 0
    %547 = vmatpush1.bf16.msra.mxu0 %v503
    %548 = vmatprep.subr.bf16.mxu0 0
    %549 = vmatpush1.bf16.msra.mxu0 %v504
    %550 = vmatprep.subr.bf16.mxu0 0
    %551 = vmatpush1.bf16.msra.mxu0 %v505
    %552 = vmatprep.subr.bf16.mxu0 0
    %553 = vmatpush1.bf16.msra.mxu0 %v506
    %554 = vmatprep.subr.bf16.mxu0 0
    %555 = vmatpush1.bf16.msra.mxu0 %v507
    %556 = vmatprep.mubr.bf16.mxu0 %v382
    %557 = vmatmul.mubr.bf16.gmra.mrb[0].mxu0 %v381
    %v558 = vpop.f32.mrb[0].mxu0
    %v559 = vadd.f32 %v426, %v558
    %v560 = vpop.f32.mrb[0].mxu0
    %v561 = vpop.f32.mrb[0].mxu0
    %v562 = vadd.f32 %v426, %v561
    %v563 = vpop.f32.mrb[0].mxu0
    %564 = vmatprep.mubr.bf16.mxu0 %v384
    %565 = vmatmul.mubr.bf16.gmra.mrb[0].mxu0 %v383
    %v566 = vpop.f32.mrb[0].mxu0
    %v567 = vadd.f32 %v426, %v566
    %v568 = vpop.f32.mrb[0].mxu0
    %v569 = vpop.f32.mrb[0].mxu0
    %v570 = vadd.f32 %v426, %v569
    %v571 = vpop.f32.mrb[0].mxu0
    %572 = vmatprep.mubr.bf16.mxu0 %v386
    %573 = vmatmul.mubr.bf16.gmra.mrb[0].mxu0 %v385
    %v574 = vpop.f32.mrb[0].mxu0
    %v575 = vadd.f32 %v426, %v574
    %v576 = vpop.f32.mrb[0].mxu0
    %v577 = vpop.f32.mrb[0].mxu0
    %v578 = vadd.f32 %v426, %v577
    %v579 = vpop.f32.mrb[0].mxu0
    %580 = vmatprep.mubr.bf16.mxu0 %v388
    %581 = vmatmul.mubr.bf16.gmra.mrb[0].mxu0 %v387
    %v582 = vpop.f32.mrb[0].mxu0
    %v583 = vadd.f32 %v426, %v582
    %v584 = vpop.f32.mrb[0].mxu0
    %v585 = vpop.f32.mrb[0].mxu0
    %v586 = vadd.f32 %v426, %v585
    %v587 = vpop.f32.mrb[0].mxu0
    %588 = vdwg.mxu0
    %v589 = vadd.f32 %v69, %v559
    %v590 = vadd.f32 %v70, %v562
    %v591 = vadd.f32 %v71, %v567
    %v592 = vadd.f32 %v72, %v570
    %v593 = vadd.f32 %v73, %v575
    %v594 = vadd.f32 %v74, %v578
    %v595 = vadd.f32 %v75, %v583
    %v596 = vadd.f32 %v76, %v586
    %597 = vst [vmem:[#allocation8] sm:$0xff] %v589
    %598 = vst [vmem:[#allocation8 + $0x8] sm:$0xff] %v590
    %599 = vst [vmem:[#allocation8 + $0x10] sm:$0xff] %v591
    %600 = vst [vmem:[#allocation8 + $0x18] sm:$0xff] %v592
    %601 = vst [vmem:[#allocation8 + $0x20] sm:$0xff] %v593
    %602 = vst [vmem:[#allocation8 + $0x28] sm:$0xff] %v594
    %603 = vst [vmem:[#allocation8 + $0x30] sm:$0xff] %v595
    %604 = vst [vmem:[#allocation8 + $0x38] sm:$0xff] %v596
    // Predicated region
    $region42: #{tpu_custom_call.1} parent=1 // pred_check
      _
    $region43: #{tpu_custom_call.1} parent=1 // pred_check_branch
      %606 = sbr.rel (0) target = $region45
    $region44: #{tpu_custom_call.1} parent=1 // pred_region
      %s608 = ssub.s32 1024, 1024
      %609 = vsyncadd [#allocation4], %s608
      %s610 = sshll.u32 [#allocation8], 4
      %s611 = int_to_ptr.vmem [resolvable:$true] %s610
      %616 = dma.vmem_to_hbm [thread:$0]  %s611, 1024, %s7, [#allocation4], 128, 128, 8
    $region45: #{tpu_custom_call.1} parent=1 // pred_fallthru
      _
    // Predicated region
    $region46: #{tpu_custom_call.1} parent=1 // pred_check
      _
    $region47: #{tpu_custom_call.1} parent=1 // pred_check_branch
      %618 = sbr.rel (0) target = $region49
    $region48: #{tpu_custom_call.1} parent=1 // pred_region
      %619 = dma.done [#allocation4], 1024
    $region49: #{tpu_custom_call.1} parent=1 // pred_fallthru
      _
    %620 = vsyncpa [#allocation3], 1
    %621 = vsyncpa [#allocation6], 1
    %622 = vsyncpa [#allocation4], 1

</llo_original>
